<compile_context>
chip_gen: v6e
topology: v6e:2x2x1
jax: 0.10.0
libtpu: 0.0.40
codegen_flags: <defaults>
</compile_context>

<pallas_src>
import functools

import jax
import jax.numpy as jnp
from jax import lax
from jax.experimental import pallas as pl
from jax.experimental.pallas import tpu as pltpu


def _dah_kernel(x_ref, w1_ref, b1_ref, w2_ref, b2_ref, o_ref):
    # x_ref:  (TM, Dp)    row tile; Dp = p*D lanes, p tokens packed per row
    # w1_ref: (Dp, Dhp)   block-diagonal fc1 weight (p copies of (D, Dh))
    # b1_ref: (1,  Dhp)   fc1 bias tiled p times
    # w2_ref: (Dhp, Dp)   block-diagonal fc2 weight (p copies of (Dh, D))
    # b2_ref: (1,  Dp)    fc2 bias tiled p times
    x = x_ref[...]

    # fc1 (MXU, f32 accumulation)
    h = jnp.dot(x, w1_ref[...], preferred_element_type=jnp.float32)
    h = h + b1_ref[...].astype(jnp.float32)

    # exact (erf-based) GELU -- matches torch.nn.GELU() default semantics
    h = 0.5 * h * (1.0 + lax.erf(h * 0.7071067811865476))

    # fc2 (MXU, f32 accumulation)
    o = jnp.dot(h.astype(x.dtype), w2_ref[...], preferred_element_type=jnp.float32)
    o = o + b2_ref[...].astype(jnp.float32)

    o_ref[...] = o.astype(o_ref.dtype)


@functools.partial(jax.jit, static_argnames=("tile_m",))
def dah_forward(x, w1, b1, w2, b2, *, tile_m=2048):
    """Fused DAH forward. x: (..., D) -> (..., D).

    w1: (D, Dh)  b1: (1, Dh)  w2: (Dh, D)  b2: (1, D)
    (weights stored as (in_features, out_features), i.e. transposed vs torch).
    """
    orig_shape = x.shape
    d = orig_shape[-1]
    dh = w1.shape[1]

    x2 = x.reshape(-1, d)
    m = x2.shape[0]

    # Pack p tokens per 128-lane row when shapes allow (free reshape in HBM).
    # Falls back to p=1 (still correct, just narrower lanes) otherwise.
    p = 1
    if d < 128 and 128 % d == 0 and m % (128 // d) == 0:
        p = 128 // d

    mp = m // p
    dp = d * p
    dhp = dh * p

    xp = x2.reshape(mp, dp)

    if p > 1:
        eye1 = jnp.eye(p, dtype=w1.dtype)
        w1p = jnp.kron(eye1, w1)                       # (dp, dhp) block-diag
        w2p = jnp.kron(eye1.astype(w2.dtype), w2)      # (dhp, dp) block-diag
        b1p = jnp.tile(b1, (1, p))                     # (1, dhp)
        b2p = jnp.tile(b2, (1, p))                     # (1, dp)
    else:
        w1p, b1p, w2p, b2p = w1, b1, w2, b2

    # Large row tiles (multiple of 8/16, bf16-safe); shrink to full array if
    # the whole problem is smaller than one tile (block == full dim is legal).
    tm = min(tile_m, mp)
    grid = (pl.cdiv(mp, tm),)

    cost = pl.CostEstimate(
        flops=int(4 * mp * dp * dhp),                  # two matmuls (packed)
        transcendentals=int(mp * dhp),                 # one erf per hidden elem
        bytes_accessed=int(2 * mp * dp * x.dtype.itemsize
                           + 2 * dp * dhp * w1.dtype.itemsize),
    )

    out = pl.pallas_call(
        _dah_kernel,
        out_shape=jax.ShapeDtypeStruct((mp, dp), x.dtype),
        grid_spec=pltpu.PrefetchScalarGridSpec(
            num_scalar_prefetch=0,
            grid=grid,
            in_specs=[
                pl.BlockSpec((tm, dp), lambda i: (i, 0)),    # x row tile
                pl.BlockSpec((dp, dhp), lambda i: (0, 0)),   # w1 (full, VMEM-resident)
                pl.BlockSpec((1, dhp), lambda i: (0, 0)),    # b1
                pl.BlockSpec((dhp, dp), lambda i: (0, 0)),   # w2
                pl.BlockSpec((1, dp), lambda i: (0, 0)),     # b2
            ],
            out_specs=pl.BlockSpec((tm, dp), lambda i: (i, 0)),
        ),
        compiler_params=pltpu.CompilerParams(
            dimension_semantics=("parallel",),               # megacore-shard rows
        ),
        cost_estimate=cost,
    )(xp, w1p, b1p, w2p, b2p)

    return out.reshape(orig_shape)


def dah_reference(x, w1, b1, w2, b2):
    """Pure-JAX reference matching PyTorch DAH.forward semantics."""
    h = x @ w1 + b1[0]
    h = 0.5 * h * (1.0 + lax.erf(h / jnp.sqrt(jnp.float32(2.0))))
    return h @ w2 + b2[0]


if __name__ == "__main__":
    # Module config (DAH defaults): D_features=32, mlp_ratio=0.25 -> D_hidden=8
    D_features = 32
    mlp_ratio = 0.25
    D_hidden = int(D_features * mlp_ratio)

    # Input: (batch=2, seq=8, D_features=32)
    B, N = 2, 8

    key = jax.random.PRNGKey(0)
    kx, k1, k2, k3, k4 = jax.random.split(key, 5)

    x = jax.random.normal(kx, (B, N, D_features), dtype=jnp.float32)

    # Deterministic synthetic parameters (shapes follow nn.Linear in DAH,
    # stored as (in_features, out_features), i.e. transposed vs torch).
    w1 = jax.random.normal(k1, (D_features, D_hidden), dtype=jnp.float32) * 0.1
    b1 = jax.random.normal(k2, (1, D_hidden), dtype=jnp.float32) * 0.1
    w2 = jax.random.normal(k3, (D_hidden, D_features), dtype=jnp.float32) * 0.1
    b2 = jax.random.normal(k4, (1, D_features), dtype=jnp.float32) * 0.1

    out = dah_forward(x, w1, b1, w2, b2)
    out = jax.block_until_ready(out)

    ref = dah_reference(x, w1, b1, w2, b2)
    assert out.shape == x.shape
    assert jnp.allclose(out, ref, atol=1e-5, rtol=1e-5), float(
        jnp.max(jnp.abs(out - ref))
    )

    print("KERNEL_OK")
</pallas_src>

<mosaic_0001>
module attributes {stable_mosaic.version = 11 : i64} {
  func.func @_dah_kernel(%arg0: i32, %arg1: memref<4x128xf32, #tpu.memory_space<vmem>>, %arg2: memref<128x32xf32, #tpu.memory_space<vmem>>, %arg3: memref<1x32xf32, #tpu.memory_space<vmem>>, %arg4: memref<32x128xf32, #tpu.memory_space<vmem>>, %arg5: memref<1x128xf32, #tpu.memory_space<vmem>>, %arg6: memref<4x128xf32, #tpu.memory_space<vmem>>) attributes {dimension_semantics = [#tpu.dimension_semantics<parallel>], iteration_bounds = array<i64: 1>, scalar_prefetch = 0 : i64, scratch_operands = 0 : i64, tpu.core_type = #tpu.core_type<tc>, window_params = [{transform_indices = @transform_0, window_bounds = array<i64: 4, 128>}, {pipeline_mode = #tpu.pipeline_mode<synchronous>, transform_indices = @transform_1, window_bounds = array<i64: 128, 32>}, {pipeline_mode = #tpu.pipeline_mode<synchronous>, transform_indices = @transform_2, window_bounds = array<i64: 1, 32>}, {pipeline_mode = #tpu.pipeline_mode<synchronous>, transform_indices = @transform_3, window_bounds = array<i64: 32, 128>}, {pipeline_mode = #tpu.pipeline_mode<synchronous>, transform_indices = @transform_4, window_bounds = array<i64: 1, 128>}, {transform_indices = @transform_5, window_bounds = array<i64: 4, 128>}]} {
    %c0 = arith.constant 0 : index
    %c0_0 = arith.constant 0 : index
    %0 = vector.load %arg1[%c0, %c0_0] : memref<4x128xf32, #tpu.memory_space<vmem>>, vector<4x128xf32>
    %c0_1 = arith.constant 0 : index
    %c0_2 = arith.constant 0 : index
    %1 = vector.load %arg2[%c0_1, %c0_2] : memref<128x32xf32, #tpu.memory_space<vmem>>, vector<128x32xf32>
    %cst = arith.constant dense<0.000000e+00> : vector<4x32xf32>
    %2 = tpu.matmul %0, %1, %cst {dimension_numbers = #tpu.dot_dimension_numbers<[1], [0], [0], [1], [0, 0, 1, 1], [], []>} : vector<4x128xf32>, vector<128x32xf32>, vector<4x32xf32> -> vector<4x32xf32>
    %c0_3 = arith.constant 0 : index
    %c0_4 = arith.constant 0 : index
    %3 = vector.load %arg3[%c0_3, %c0_4] : memref<1x32xf32, #tpu.memory_space<vmem>>, vector<1x32xf32>
    %4 = vector.broadcast %3 : vector<1x32xf32> to vector<4x32xf32>
    %5 = arith.addf %2, %4 : vector<4x32xf32>
    %cst_5 = arith.constant 5.000000e-01 : f32
    %6 = vector.broadcast %cst_5 : f32 to vector<4x32xf32>
    %7 = arith.mulf %6, %5 : vector<4x32xf32>
    %cst_6 = arith.constant 0.707106769 : f32
    %8 = vector.broadcast %cst_6 : f32 to vector<4x32xf32>
    %9 = arith.mulf %5, %8 : vector<4x32xf32>
    %10 = math.erf %9 : vector<4x32xf32>
    %cst_7 = arith.constant 1.000000e+00 : f32
    %11 = vector.broadcast %cst_7 : f32 to vector<4x32xf32>
    %12 = arith.addf %11, %10 : vector<4x32xf32>
    %13 = arith.mulf %7, %12 : vector<4x32xf32>
    %c0_8 = arith.constant 0 : index
    %c0_9 = arith.constant 0 : index
    %14 = vector.load %arg4[%c0_8, %c0_9] : memref<32x128xf32, #tpu.memory_space<vmem>>, vector<32x128xf32>
    %cst_10 = arith.constant dense<0.000000e+00> : vector<4x128xf32>
    %15 = tpu.matmul %13, %14, %cst_10 {dimension_numbers = #tpu.dot_dimension_numbers<[1], [0], [0], [1], [0, 0, 1, 1], [], []>} : vector<4x32xf32>, vector<32x128xf32>, vector<4x128xf32> -> vector<4x128xf32>
    %c0_11 = arith.constant 0 : index
    %c0_12 = arith.constant 0 : index
    %16 = vector.load %arg5[%c0_11, %c0_12] : memref<1x128xf32, #tpu.memory_space<vmem>>, vector<1x128xf32>
    %17 = vector.broadcast %16 : vector<1x128xf32> to vector<4x128xf32>
    %18 = arith.addf %15, %17 : vector<4x128xf32>
    %c0_13 = arith.constant 0 : index
    %c0_14 = arith.constant 0 : index
    %19 = vector.load %arg6[%c0_13, %c0_14] : memref<4x128xf32, #tpu.memory_space<vmem>>, vector<4x128xf32>
    tpu.vector_store %arg6[%c0_13, %c0_14], %18 {strides = array<i32>} : memref<4x128xf32, #tpu.memory_space<vmem>>, vector<4x128xf32>,
    return
  }
  func.func @transform_0(%arg0: i32) -> (i32, i32) {
    %c0_i32 = arith.constant 0 : i32
    %c0_i32_0 = arith.constant 0 : i32
    return %arg0, %c0_i32 : i32, i32
  }
  func.func @transform_1(%arg0: i32) -> (i32, i32) {
    %c0_i32 = arith.constant 0 : i32
    %c0_i32_0 = arith.constant 0 : i32
    %c0_i32_1 = arith.constant 0 : i32
    return %c0_i32, %c0_i32_0 : i32, i32
  }
  func.func @transform_2(%arg0: i32) -> (i32, i32) {
    %c0_i32 = arith.constant 0 : i32
    %c0_i32_0 = arith.constant 0 : i32
    %c0_i32_1 = arith.constant 0 : i32
    return %c0_i32, %c0_i32_0 : i32, i32
  }
  func.func @transform_3(%arg0: i32) -> (i32, i32) {
    %c0_i32 = arith.constant 0 : i32
    %c0_i32_0 = arith.constant 0 : i32
    %c0_i32_1 = arith.constant 0 : i32
    return %c0_i32, %c0_i32_0 : i32, i32
  }
  func.func @transform_4(%arg0: i32) -> (i32, i32) {
    %c0_i32 = arith.constant 0 : i32
    %c0_i32_0 = arith.constant 0 : i32
    %c0_i32_1 = arith.constant 0 : i32
    return %c0_i32, %c0_i32_0 : i32, i32
  }
  func.func @transform_5(%arg0: i32) -> (i32, i32) {
    %c0_i32 = arith.constant 0 : i32
    %c0_i32_0 = arith.constant 0 : i32
    return %arg0, %c0_i32 : i32, i32
  }
}

</mosaic_0001>

<llo_original>
// kernel: dah_forward.1
$region0: #{dah_forward.1}
  #allocation0 [shape = 'u32[]', space=smem, size = 0x4, offset = 0x4, fixed_abs, tag = 'smem constant byte address 0x4 - core index']
  #allocation1 [shape = 'u32[144,128]{1,0:T(1,128)}', space=vmem, size = 0x12000, scoped, tag = 'internal scratch']
  %s0 = inlined_call_operand.vmem [shape: f32[4,128], index: 0, kind: input, shape index: {}]
  %s1 = inlined_call_operand.vmem [shape: f32[128,32], index: 1, kind: input, shape index: {}]
  %s2 = inlined_call_operand.vmem [shape: f32[1,32], index: 2, kind: input, shape index: {}]
  %s3 = inlined_call_operand.vmem [shape: f32[32,128], index: 3, kind: input, shape index: {}]
  %s4 = inlined_call_operand.vmem [shape: f32[1,128], index: 4, kind: input, shape index: {}]
  %s5 = inlined_call_operand.vmem [shape: f32[4,128], index: 5, kind: output, shape index: {}]
  %s6 = sld [smem:[#allocation0]]
  $region30: #{dah_forward.1} parent=0
    _
  %s8 = ssub.s32 1, %s6
  %s9 = scalar_select 0, %s8, %s6
  // Predicated region
  $region2: #{dah_forward.1} parent=0 // pred_check
    _
  $region3: #{dah_forward.1} parent=0 // pred_check_branch
    %11 = sbr.rel (0) target = $region5
  $region4: #{dah_forward.1} parent=0 // pred_region
    _
  $region5: #{dah_forward.1} parent=0 // pred_fallthru
    _
  // Predicated region
  $region6: #{dah_forward.1} parent=0 // pred_check
    _
  $region7: #{dah_forward.1} parent=0 // pred_check_branch
    %13 = sbr.rel (0) target = $region9
  $region8: #{dah_forward.1} parent=0 // pred_region
    _
  $region9: #{dah_forward.1} parent=0 // pred_fallthru
    _
  // Predicated region
  $region10: #{dah_forward.1} parent=0 // pred_check
    _
  $region11: #{dah_forward.1} parent=0 // pred_check_branch
    %15 = sbr.rel (0) target = $region13
  $region12: #{dah_forward.1} parent=0 // pred_region
    _
  $region13: #{dah_forward.1} parent=0 // pred_fallthru
    _
  // Predicated region
  $region14: #{dah_forward.1} parent=0 // pred_check
    _
  $region15: #{dah_forward.1} parent=0 // pred_check_branch
    %17 = sbr.rel (0) target = $region17
  $region16: #{dah_forward.1} parent=0 // pred_region
    _
  $region17: #{dah_forward.1} parent=0 // pred_fallthru
    _
  // Predicated region
  $region18: #{dah_forward.1} parent=0 // pred_check
    _
  $region19: #{dah_forward.1} parent=0 // pred_check_branch
    %19 = sbr.rel (0) target = $region21
  $region20: #{dah_forward.1} parent=0 // pred_region
    _
  $region21: #{dah_forward.1} parent=0 // pred_fallthru
    _
  %v20 = vld [vmem:[%s0] sm:$0xf]
  %v21 = vld [vmem:[%s1] sm:$0xff]
  %v22 = vld [vmem:[%s1 + $0x8] sm:$0xff]
  %v23 = vld [vmem:[%s1 + $0x10] sm:$0xff]
  %v24 = vld [vmem:[%s1 + $0x18] sm:$0xff]
  %v25 = vld [vmem:[%s1 + $0x20] sm:$0xff]
  %v26 = vld [vmem:[%s1 + $0x28] sm:$0xff]
  %v27 = vld [vmem:[%s1 + $0x30] sm:$0xff]
  %v28 = vld [vmem:[%s1 + $0x38] sm:$0xff]
  %v29 = vld [vmem:[%s1 + $0x40] sm:$0xff]
  %v30 = vld [vmem:[%s1 + $0x48] sm:$0xff]
  %v31 = vld [vmem:[%s1 + $0x50] sm:$0xff]
  %v32 = vld [vmem:[%s1 + $0x58] sm:$0xff]
  %v33 = vld [vmem:[%s1 + $0x60] sm:$0xff]
  %v34 = vld [vmem:[%s1 + $0x68] sm:$0xff]
  %v35 = vld [vmem:[%s1 + $0x70] sm:$0xff]
  %v36 = vld [vmem:[%s1 + $0x78] sm:$0xff]
  %v37 = vld [vmem:[%s2] sm:$0x1]
  %v39 = vlaneseq
  %v40 = vshrl.u32 %v39, 7
  %v41 = vsub.s32 0, %v40
  %v42 = vrot.slane %v37, %v41
  %44 = vmatprep.subr.mxu0 0.0
  %45 = vmatpush1.msra.mxu0 %v36
  %46 = vmatprep.subr.mxu0 0.0
  %47 = vmatpush1.msra.mxu0 %v35
  %48 = vmatprep.subr.mxu0 0.0
  %49 = vmatpush1.msra.mxu0 %v34
  %50 = vmatprep.subr.mxu0 0.0
  %51 = vmatpush1.msra.mxu0 %v33
  %52 = vmatprep.subr.mxu0 0.0
  %53 = vmatpush1.msra.mxu0 %v32
  %54 = vmatprep.subr.mxu0 0.0
  %55 = vmatpush1.msra.mxu0 %v31
  %56 = vmatprep.subr.mxu0 0.0
  %57 = vmatpush1.msra.mxu0 %v30
  %58 = vmatprep.subr.mxu0 0.0
  %59 = vmatpush1.msra.mxu0 %v29
  %60 = vmatprep.subr.mxu0 0.0
  %61 = vmatpush1.msra.mxu0 %v28
  %62 = vmatprep.subr.mxu0 0.0
  %63 = vmatpush1.msra.mxu0 %v27
  %64 = vmatprep.subr.mxu0 0.0
  %65 = vmatpush1.msra.mxu0 %v26
  %66 = vmatprep.subr.mxu0 0.0
  %67 = vmatpush1.msra.mxu0 %v25
  %68 = vmatprep.subr.mxu0 0.0
  %69 = vmatpush1.msra.mxu0 %v24
  %70 = vmatprep.subr.mxu0 0.0
  %71 = vmatpush1.msra.mxu0 %v23
  %72 = vmatprep.subr.mxu0 0.0
  %73 = vmatpush1.msra.mxu0 %v22
  %74 = vmatprep.subr.mxu0 0.0
  %75 = vmatpush1.msra.mxu0 %v21
  %76 = vmatprep.subr.mxu0 0.0
  %77 = vmatpush2.msra.mxu0 0.0
  %78 = vmatprep.subr.mxu0 0.0
  %79 = vmatpush2.msra.mxu0 0.0
  %80 = vmatprep.subr.mxu0 0.0
  %81 = vmatpush2.msra.mxu0 0.0
  %82 = vmatprep.subr.mxu0 0.0
  %83 = vmatpush2.msra.mxu0 0.0
  %84 = vmatprep.subr.mxu0 0.0
  %85 = vmatpush2.msra.mxu0 0.0
  %86 = vmatprep.subr.mxu0 0.0
  %87 = vmatpush2.msra.mxu0 0.0
  %88 = vmatprep.subr.mxu0 0.0
  %89 = vmatpush2.msra.mxu0 0.0
  %90 = vmatprep.subr.mxu0 0.0
  %91 = vmatpush2.msra.mxu0 0.0
  %92 = vmatprep.subr.mxu0 0.0
  %93 = vmatpush2.msra.mxu0 0.0
  %94 = vmatprep.subr.mxu0 0.0
  %95 = vmatpush2.msra.mxu0 0.0
  %96 = vmatprep.subr.mxu0 0.0
  %97 = vmatpush2.msra.mxu0 0.0
  %98 = vmatprep.subr.mxu0 0.0
  %99 = vmatpush2.msra.mxu0 0.0
  %100 = vmatprep.subr.mxu0 0.0
  %101 = vmatpush2.msra.mxu0 0.0
  %102 = vmatprep.subr.mxu0 0.0
  %103 = vmatpush2.msra.mxu0 0.0
  %104 = vmatprep.subr.mxu0 0.0
  %105 = vmatpush2.msra.mxu0 0.0
  %106 = vmatprep.subr.mxu0 0.0
  %107 = vmatpush2.msra.mxu0 0.0
  %108 = vmatprep.mubr.f32.mxu0 0.0
  %109 = vmatmul.mubr.f32.gmra.mxu0 %v20
  %v110 = vpop.f32.mrf.mxu0
  %v111 = vadd.f32 %v42, %v110
  %v112 = vpop.f32.mrf.mxu0
  %113 = vdwg.mxu0
  %v114 = vmul.f32 %v111, 0.5
  %v115 = vmul.f32 %v111, 0.70710677
  %v116 = verf.f32.pop %v115
  %v117 = vadd.f32 %v116, 1.0
  %v118 = vmul.f32 %v114, %v117
  %v119 = vld [vmem:[%s3] sm:$0xff]
  %v120 = vld [vmem:[%s3 + $0x8] sm:$0xff]
  %v121 = vld [vmem:[%s3 + $0x10] sm:$0xff]
  %v122 = vld [vmem:[%s3 + $0x18] sm:$0xff]
  %v123 = vld [vmem:[%s4] sm:$0x1]
  %v125 = vlaneseq
  %v126 = vshrl.u32 %v125, 7
  %v127 = vsub.s32 0, %v126
  %v128 = vrot.slane %v123, %v127
  %vm130 = vcmask 261120
  %v132 = vsel %vm130, %v118, 0
  %134 = vmatprep.subr.mxu0 0.0
  %135 = vmatpush1.msra.mxu0 0.0
  %136 = vmatprep.subr.mxu0 0.0
  %137 = vmatpush1.msra.mxu0 0.0
  %138 = vmatprep.subr.mxu0 0.0
  %139 = vmatpush1.msra.mxu0 0.0
  %140 = vmatprep.subr.mxu0 0.0
  %141 = vmatpush1.msra.mxu0 0.0
  %142 = vmatprep.subr.mxu0 0.0
  %143 = vmatpush1.msra.mxu0 0.0
  %144 = vmatprep.subr.mxu0 0.0
  %145 = vmatpush1.msra.mxu0 0.0
  %146 = vmatprep.subr.mxu0 0.0
  %147 = vmatpush1.msra.mxu0 0.0
  %148 = vmatprep.subr.mxu0 0.0
  %149 = vmatpush1.msra.mxu0 0.0
  %150 = vmatprep.subr.mxu0 0.0
  %151 = vmatpush1.msra.mxu0 0.0
  %152 = vmatprep.subr.mxu0 0.0
  %153 = vmatpush1.msra.mxu0 0.0
  %154 = vmatprep.subr.mxu0 0.0
  %155 = vmatpush1.msra.mxu0 0.0
  %156 = vmatprep.subr.mxu0 0.0
  %157 = vmatpush1.msra.mxu0 0.0
  %158 = vmatprep.subr.mxu0 0.0
  %159 = vmatpush1.msra.mxu0 %v122
  %160 = vmatprep.subr.mxu0 0.0
  %161 = vmatpush1.msra.mxu0 %v121
  %162 = vmatprep.subr.mxu0 0.0
  %163 = vmatpush1.msra.mxu0 %v120
  %164 = vmatprep.subr.mxu0 0.0
  %165 = vmatpush1.msra.mxu0 %v119
  %166 = vmatprep.subr.mxu0 0.0
  %167 = vmatpush2.msra.mxu0 0.0
  %168 = vmatprep.subr.mxu0 0.0
  %169 = vmatpush2.msra.mxu0 0.0
  %170 = vmatprep.subr.mxu0 0.0
  %171 = vmatpush2.msra.mxu0 0.0
  %172 = vmatprep.subr.mxu0 0.0
  %173 = vmatpush2.msra.mxu0 0.0
  %174 = vmatprep.subr.mxu0 0.0
  %175 = vmatpush2.msra.mxu0 0.0
  %176 = vmatprep.subr.mxu0 0.0
  %177 = vmatpush2.msra.mxu0 0.0
  %178 = vmatprep.subr.mxu0 0.0
  %179 = vmatpush2.msra.mxu0 0.0
  %180 = vmatprep.subr.mxu0 0.0
  %181 = vmatpush2.msra.mxu0 0.0
  %182 = vmatprep.subr.mxu0 0.0
  %183 = vmatpush2.msra.mxu0 0.0
  %184 = vmatprep.subr.mxu0 0.0
  %185 = vmatpush2.msra.mxu0 0.0
  %186 = vmatprep.subr.mxu0 0.0
  %187 = vmatpush2.msra.mxu0 0.0
  %188 = vmatprep.subr.mxu0 0.0
  %189 = vmatpush2.msra.mxu0 0.0
  %190 = vmatprep.subr.mxu0 0.0
  %191 = vmatpush2.msra.mxu0 0.0
  %192 = vmatprep.subr.mxu0 0.0
  %193 = vmatpush2.msra.mxu0 0.0
  %194 = vmatprep.subr.mxu0 0.0
  %195 = vmatpush2.msra.mxu0 0.0
  %196 = vmatprep.subr.mxu0 0.0
  %197 = vmatpush2.msra.mxu0 0.0
  %198 = vmatprep.mubr.f32.mxu0 0.0
  %199 = vmatmul.mubr.f32.gmra.mxu0 %v132
  %v200 = vpop.f32.mrf.mxu0
  %v201 = vadd.f32 %v128, %v200
  %v202 = vpop.f32.mrf.mxu0
  %203 = vdwg.mxu0
  %204 = vst [vmem:[%s5] sm:$0xf] %v201
  // Predicated region
  $region22: #{dah_forward.1} parent=0 // pred_check
    _
  $region23: #{dah_forward.1} parent=0 // pred_check_branch
    %206 = sbr.rel (0) target = $region25
  $region24: #{dah_forward.1} parent=0 // pred_region
    _
  $region25: #{dah_forward.1} parent=0 // pred_fallthru
    _
  // Predicated region
  $region26: #{dah_forward.1} parent=0 // pred_check
    _
  $region27: #{dah_forward.1} parent=0 // pred_check_branch
    %208 = sbr.rel (0) target = $region29
  $region28: #{dah_forward.1} parent=0 // pred_region
    _
  $region29: #{dah_forward.1} parent=0 // pred_fallthru
    _

</llo_original>
